<compile_context>
chip_gen: v7x
topology: tpu7x:2x2x1
jax: 0.10.0
libtpu: 0.0.40
codegen_flags: <defaults>
</compile_context>

<pallas_src>
import functools
import math

import jax
import jax.numpy as jnp
from jax import lax
from jax.experimental import pallas as pl
from jax.experimental.pallas import tpu as pltpu


def _round_up(x: int, m: int) -> int:
    return ((x + m - 1) // m) * m


def _vmem_limit_bytes():
    """~3/4 of physical VMEM (=96 MiB on 128 MiB v5e/v6e, =48 MiB on 64 MiB v7x)."""
    try:
        cap = int(pltpu.get_tpu_info().vmem_capacity_bytes)
        return max(32 * 1024 * 1024, (cap * 3) // 4)
    except Exception:
        return None  # fall back to the compiler's default scoped-VMEM limit


def _compiler_params(dimension_semantics, vmem_limit):
    kwargs = dict(dimension_semantics=dimension_semantics)
    if vmem_limit is not None:
        kwargs["vmem_limit_bytes"] = int(vmem_limit)
    return pltpu.CompilerParams(**kwargs)


# --------------------------------------------------------------------------
# Pass 1: packed K/V projection (one matmul per x tile, all heads on lanes).
# --------------------------------------------------------------------------
def _kv_proj_kernel(x_ref, w_ref, b_ref, k_ref, v_ref, *, hdp: int):
    kv = jnp.dot(x_ref[0], w_ref[...], preferred_element_type=jnp.float32)
    kv = (kv + b_ref[...]).astype(k_ref.dtype)      # (TL, 2*H*Dp)
    k_ref[0] = kv[:, :hdp]
    v_ref[0] = kv[:, hdp:]


# --------------------------------------------------------------------------
# Pass 2: flash attention + fused output projection + residual.
# --------------------------------------------------------------------------
def _flash_attn_kernel(xq_ref, k_ref, v_ref, wq_ref, bq_ref, wo_ref, bo_ref,
                       o_ref, q_sc, m_sc, l_sc, acc_sc,
                       *, num_heads: int, head_dim_p: int, seq_len: int,
                       padded_len: int):
    f32 = jnp.float32
    ki = pl.program_id(2)
    nkv = pl.num_programs(2)
    dp = head_dim_p

    @pl.when(ki == 0)
    def _init():
        # Project q for this tile once (packed heads); the 1/sqrt(head_dim)
        # scale is already folded into wq/bq in the wrapper.
        q = jnp.dot(xq_ref[0], wq_ref[...], preferred_element_type=f32) + bq_ref[...]
        q_sc[...] = q.astype(q_sc.dtype)
        m_sc[...] = jnp.full_like(m_sc, -jnp.inf)
        l_sc[...] = jnp.zeros_like(l_sc)
        acc_sc[...] = jnp.zeros_like(acc_sc)

    k_tile = k_ref[0]                      # (TKV, H*Dp) input dtype
    v_tile = v_ref[0]
    tkv = k_tile.shape[0]

    need_mask = padded_len != seq_len      # static Python bool
    if need_mask:
        kv_pos = lax.broadcasted_iota(jnp.int32, (1, tkv), 1) + ki * tkv
        kv_valid = kv_pos < seq_len        # (1, TKV); padded keys masked out

    # Unrolled per-head flash step on lane-aligned 128-wide slices; bounds the
    # live f32 (TQ, TKV) intermediates to one head at a time.
    for h in range(num_heads):
        sl = slice(h * dp, (h + 1) * dp)
        s = lax.dot_general(q_sc[:, sl], k_tile[:, sl],
                            (((1,), (1,)), ((), ())),
                            preferred_element_type=f32)         # (TQ, TKV)
        if need_mask:
            s = jnp.where(kv_valid, s, -1e30)
        m_prev = m_sc[h]                                          # (TQ, 1)
        m_new = jnp.maximum(m_prev, s.max(axis=-1, keepdims=True))
        alpha = jnp.exp(m_prev - m_new)
        p = jnp.exp(s - m_new)
        l_sc[h] = alpha * l_sc[h] + p.sum(axis=-1, keepdims=True)
        acc_sc[:, sl] = alpha * acc_sc[:, sl] + jnp.dot(
            p.astype(v_tile.dtype), v_tile[:, sl], preferred_element_type=f32)
        m_sc[h] = m_new

    @pl.when(ki == nkv - 1)
    def _finalize():
        # Per-head normalization in place, then ONE output projection with
        # K = H*Dp (no cross-head reduce), bias and residual add.
        for h in range(num_heads):
            sl = slice(h * dp, (h + 1) * dp)
            acc_sc[:, sl] = acc_sc[:, sl] * pl.reciprocal(l_sc[h], approx=True)
        out = jnp.dot(acc_sc[...].astype(wo_ref.dtype), wo_ref[...],
                      preferred_element_type=f32)
        out = out + bo_ref[...] + xq_ref[0].astype(f32)
        o_ref[0] = out.astype(o_ref.dtype)


# --------------------------------------------------------------------------
# Parameter folding / packing.
# --------------------------------------------------------------------------
def prepare_params(params, *, channels: int, num_heads: int, dtype):
    """Fold conv + MHA in-projections, pack heads along lanes, pad head dim."""
    (wqc, bqc, wkc, bkc, wvc, bvc, wq, bq, wk, bk, wv, bv, wo, bo) = params
    c, nh = channels, num_heads
    d = c // nh
    dp = _round_up(d, 128)
    f32 = jnp.float32

    # (x @ Wc.T + bc) @ W.T + b  ==  x @ (W @ Wc).T + (W @ bc + b)
    wq_eff = wq.astype(f32) @ wqc.astype(f32)
    bq_eff = wq.astype(f32) @ bqc.astype(f32) + bq.astype(f32)
    wk_eff = wk.astype(f32) @ wkc.astype(f32)
    bk_eff = wk.astype(f32) @ bkc.astype(f32) + bk.astype(f32)
    wv_eff = wv.astype(f32) @ wvc.astype(f32)
    bv_eff = wv.astype(f32) @ bvc.astype(f32) + bv.astype(f32)

    # Fold the attention scale into the query path (zero in-kernel cost).
    scale = 1.0 / (d ** 0.5)
    wq_eff = wq_eff * scale
    bq_eff = bq_eff * scale

    def pack_in(w_eff, b_eff):
        # (C_out=C, C_in=C) -> (C_in, H, d) -> pad d->Dp -> (C_in, H*Dp)
        w = w_eff.reshape(nh, d, c).transpose(2, 0, 1)
        w = jnp.pad(w, ((0, 0), (0, 0), (0, dp - d))).reshape(c, nh * dp)
        bb = jnp.pad(b_eff.reshape(nh, d), ((0, 0), (0, dp - d))).reshape(1, nh * dp)
        return w.astype(dtype), bb.astype(dtype)

    wq_p, bq_p = pack_in(wq_eff, bq_eff)
    wk_p, bk_p = pack_in(wk_eff, bk_eff)
    wv_p, bv_p = pack_in(wv_eff, bv_eff)
    w_kv = jnp.concatenate([wk_p, wv_p], axis=1)                 # (C, 2*H*Dp)
    b_kv = jnp.concatenate([bk_p, bv_p], axis=1)                 # (1, 2*H*Dp)

    # Output projection: (C_out, C_in=H*d) -> (H*Dp, C_out); padded rows are 0.
    wo_p = wo.astype(f32).reshape(c, nh, d).transpose(1, 2, 0)   # (H, d, C)
    wo_p = jnp.pad(wo_p, ((0, 0), (0, dp - d), (0, 0))).reshape(nh * dp, c)
    wo_p = wo_p.astype(dtype)
    bo_p = bo.astype(f32).reshape(1, c).astype(dtype)

    return (wq_p, bq_p, w_kv, b_kv, wo_p, bo_p), dp


def _choose_tiles(l: int, q_tile: int, kv_tile: int):
    q_tile = _round_up(max(q_tile, 8), 8)
    kv_tile = _round_up(max(kv_tile, 8), 8)
    if max(q_tile, kv_tile) % min(q_tile, kv_tile) != 0:
        q_tile = kv_tile = max(q_tile, kv_tile)
    if l % q_tile == 0 and l % kv_tile == 0:
        return q_tile, kv_tile, l
    l8 = _round_up(l, 8)
    big = max(q_tile, kv_tile)
    if l8 <= big:                      # whole sequence fits in one tile
        return l8, l8, l8
    return q_tile, kv_tile, _round_up(l8, big)


# --------------------------------------------------------------------------
# Wrapper.
# --------------------------------------------------------------------------
def self_attention_2d(x, params, *, num_heads: int, q_tile: int = 256,
                      kv_tile: int = 128):
    """x: (B, C, H, W) NCHW (PyTorch convention).  Returns (B, C, H, W)."""
    b, c, hh, ww = x.shape
    assert c % num_heads == 0, "channels must be divisible by num_heads"
    l = hh * ww
    dt = x.dtype

    (wq_p, bq_p, w_kv, b_kv, wo_p, bo_p), dp = prepare_params(
        params, channels=c, num_heads=num_heads, dtype=dt)
    hdp = num_heads * dp

    # NCHW -> (B, L, C), matching x.flatten(2, 3).permute(0, 2, 1).
    # TODO(synk): a (B, C, L)-native kernel (C on sublanes, L on lanes) would
    #             remove this wrapper-side HBM relayout entirely.
    x_seq = jnp.transpose(x.reshape(b, c, l), (0, 2, 1))

    tq, tkv, lp = _choose_tiles(l, q_tile, kv_tile)
    if lp != l:
        x_seq = jnp.pad(x_seq, ((0, 0), (0, lp - l), (0, 0)))

    vmem_limit = _vmem_limit_bytes()

    # ---- Pass 1: project K/V once per sequence position (packed heads). ----
    tl = max(tq, tkv)
    k_arr, v_arr = pl.pallas_call(
        functools.partial(_kv_proj_kernel, hdp=hdp),
        out_shape=(jax.ShapeDtypeStruct((b, lp, hdp), dt),
                   jax.ShapeDtypeStruct((b, lp, hdp), dt)),
        grid_spec=pltpu.PrefetchScalarGridSpec(
            num_scalar_prefetch=0,
            grid=(b, lp // tl),
            in_specs=[
                pl.BlockSpec((1, tl, c), lambda bi, li: (bi, li, 0)),
                pl.BlockSpec(w_kv.shape, lambda bi, li: (0, 0)),
                pl.BlockSpec(b_kv.shape, lambda bi, li: (0, 0)),
            ],
            out_specs=[
                pl.BlockSpec((1, tl, hdp), lambda bi, li: (bi, li, 0)),
                pl.BlockSpec((1, tl, hdp), lambda bi, li: (bi, li, 0)),
            ],
        ),
        compiler_params=_compiler_params(("parallel", "parallel"), vmem_limit),
    )(x_seq, w_kv, b_kv)

    # ---- Pass 2: flash attention + output projection + residual. ----
    # TODO(synk): the constant-index weight BlockSpecs could additionally use
    #             pipeline_mode=pl.Buffered(1) to drop their unused 2nd buffer.
    out_seq = pl.pallas_call(
        functools.partial(_flash_attn_kernel, num_heads=num_heads,
                          head_dim_p=dp, seq_len=l, padded_len=lp),
        out_shape=jax.ShapeDtypeStruct((b, lp, c), dt),
        grid_spec=pltpu.PrefetchScalarGridSpec(
            num_scalar_prefetch=0,
            grid=(b, lp // tq, lp // tkv),
            in_specs=[
                pl.BlockSpec((1, tq, c), lambda bi, qi, ki: (bi, qi, 0)),
                pl.BlockSpec((1, tkv, hdp), lambda bi, qi, ki: (bi, ki, 0)),
                pl.BlockSpec((1, tkv, hdp), lambda bi, qi, ki: (bi, ki, 0)),
                pl.BlockSpec(wq_p.shape, lambda bi, qi, ki: (0, 0)),
                pl.BlockSpec(bq_p.shape, lambda bi, qi, ki: (0, 0)),
                pl.BlockSpec(wo_p.shape, lambda bi, qi, ki: (0, 0)),
                pl.BlockSpec(bo_p.shape, lambda bi, qi, ki: (0, 0)),
            ],
            out_specs=pl.BlockSpec((1, tq, c), lambda bi, qi, ki: (bi, qi, 0)),
            scratch_shapes=[
                pltpu.VMEM((tq, hdp), dt),                     # packed q tile
                pltpu.VMEM((num_heads, tq, 1), jnp.float32),   # running max
                pltpu.VMEM((num_heads, tq, 1), jnp.float32),   # running denom
                pltpu.VMEM((tq, hdp), jnp.float32),            # packed acc
            ],
        ),
        compiler_params=_compiler_params(
            ("parallel", "parallel", "arbitrary"), vmem_limit),
    )(x_seq, k_arr, v_arr, wq_p, bq_p, wo_p, bo_p)

    out_seq = out_seq[:, :l, :]
    return jnp.transpose(out_seq, (0, 2, 1)).reshape(b, c, hh, ww)


# --------------------------------------------------------------------------
# Parameter construction and pure-JAX reference (for validation).
# --------------------------------------------------------------------------
def make_params(key, channels, num_heads, key_dim, value_dim, dtype=jnp.float32):
    assert channels % num_heads == 0
    ks = jax.random.split(key, 14)

    def u(k, shape, fan_in):
        bound = 1.0 / (fan_in ** 0.5)
        return jax.random.uniform(k, shape, dtype, minval=-bound, maxval=bound)

    # ChannelProjBlock == 1x1 Conv2d (weights stored as (out, in)).
    # TODO(synk): if ChannelProjBlock adds normalization/activation in the
    #             original repo, that part is not reproduced here.
    wqc = u(ks[0], (channels, channels), channels)
    bqc = u(ks[1], (channels,), channels)
    wkc = u(ks[2], (key_dim, channels), channels)
    bkc = u(ks[3], (key_dim,), channels)
    wvc = u(ks[4], (value_dim, channels), channels)
    bvc = u(ks[5], (value_dim,), channels)
    # nn.MultiheadAttention with kdim/vdim != embed_dim: separate q/k/v
    # projection weights + bias split in three, then out_proj.
    wq = u(ks[6], (channels, channels), channels)
    bq = u(ks[7], (channels,), channels)
    wk = u(ks[8], (channels, key_dim), key_dim)
    bk = u(ks[9], (channels,), key_dim)
    wv = u(ks[10], (channels, value_dim), value_dim)
    bv = u(ks[11], (channels,), value_dim)
    wo = u(ks[12], (channels, channels), channels)
    bo = u(ks[13], (channels,), channels)
    return (wqc, bqc, wkc, bkc, wvc, bvc, wq, bq, wk, bk, wv, bv, wo, bo)


def reference_self_attention_2d(x, params, *, num_heads):
    """Pure-JAX reference of the PyTorch forward pass (for validation)."""
    b, c, hh, ww = x.shape
    l = hh * ww
    (wqc, bqc, wkc, bkc, wvc, bvc, wq, bq, wk, bk, wv, bv, wo, bo) = [
        p.astype(jnp.float32) for p in params]
    xs = jnp.transpose(x.reshape(b, c, l), (0, 2, 1)).astype(jnp.float32)
    q = (xs @ wqc.T + bqc) @ wq.T + bq
    k = (xs @ wkc.T + bkc) @ wk.T + bk
    v = (xs @ wvc.T + bvc) @ wv.T + bv
    d = c // num_heads

    def split(t):
        return t.reshape(b, l, num_heads, d).transpose(0, 2, 1, 3)

    qh, kh, vh = split(q), split(k), split(v)
    s = jnp.einsum("bhqd,bhkd->bhqk", qh, kh) / (d ** 0.5)
    p = jax.nn.softmax(s, axis=-1)
    oh = jnp.einsum("bhqk,bhkd->bhqd", p, vh)
    o = oh.transpose(0, 2, 1, 3).reshape(b, l, c) @ wo.T + bo + xs
    return jnp.transpose(o, (0, 2, 1)).reshape(b, c, hh, ww)


if __name__ == "__main__":
    B, C, H, W = 2, 16, 16, 16          # L = 256 -> attention grid (2, 1, 2)
    NUM_HEADS, KEY_DIM, VALUE_DIM = 2, 8, 24

    key = jax.random.PRNGKey(0)
    kx, kp = jax.random.split(key)
    x = jax.random.normal(kx, (B, C, H, W), dtype=jnp.float32)
    params = make_params(kp, C, NUM_HEADS, KEY_DIM, VALUE_DIM)

    out = self_attention_2d(x, params, num_heads=NUM_HEADS)
    jax.block_until_ready(out)
    assert out.shape == (B, C, H, W)

    ref = reference_self_attention_2d(x, params, num_heads=NUM_HEADS)
    max_err = float(jnp.max(jnp.abs(out - ref)))
    assert jnp.allclose(out, ref, atol=2e-2, rtol=2e-2), max_err

    print("KERNEL_OK")
</pallas_src>

<mosaic_0001>
module attributes {stable_mosaic.version = 11 : i64} {
  func.func @_kv_proj_kernel(%arg0: i32, %arg1: i32, %arg2: memref<1x256x16xf32, #tpu.memory_space<vmem>>, %arg3: memref<16x512xf32, #tpu.memory_space<vmem>>, %arg4: memref<1x512xf32, #tpu.memory_space<vmem>>, %arg5: memref<1x256x256xf32, #tpu.memory_space<vmem>>, %arg6: memref<1x256x256xf32, #tpu.memory_space<vmem>>) attributes {dimension_semantics = [#tpu.dimension_semantics<parallel>, #tpu.dimension_semantics<parallel>], iteration_bounds = array<i64: 2, 1>, scalar_prefetch = 0 : i64, scratch_operands = 0 : i64, tpu.core_type = #tpu.core_type<tc>, window_params = [{transform_indices = @transform_0, window_bounds = array<i64: 1, 256, 16>}, {pipeline_mode = #tpu.pipeline_mode<synchronous>, transform_indices = @transform_1, window_bounds = array<i64: 16, 512>}, {pipeline_mode = #tpu.pipeline_mode<synchronous>, transform_indices = @transform_2, window_bounds = array<i64: 1, 512>}, {transform_indices = @transform_3, window_bounds = array<i64: 1, 256, 256>}, {transform_indices = @transform_4, window_bounds = array<i64: 1, 256, 256>}]} {
    %c0 = arith.constant 0 : index
    %c0_0 = arith.constant 0 : index
    %c0_1 = arith.constant 0 : index
    %0 = vector.load %arg2[%c0, %c0_0, %c0_1] : memref<1x256x16xf32, #tpu.memory_space<vmem>>, vector<1x256x16xf32>
    %1 = vector.shape_cast %0 : vector<1x256x16xf32> to vector<256x16xf32>
    %c0_2 = arith.constant 0 : index
    %c0_3 = arith.constant 0 : index
    %2 = vector.load %arg3[%c0_2, %c0_3] : memref<16x512xf32, #tpu.memory_space<vmem>>, vector<16x512xf32>
    %cst = arith.constant dense<0.000000e+00> : vector<256x512xf32>
    %3 = tpu.matmul %1, %2, %cst {dimension_numbers = #tpu.dot_dimension_numbers<[1], [0], [0], [1], [0, 0, 1, 1], [], []>} : vector<256x16xf32>, vector<16x512xf32>, vector<256x512xf32> -> vector<256x512xf32>
    %c0_4 = arith.constant 0 : index
    %c0_5 = arith.constant 0 : index
    %4 = vector.load %arg4[%c0_4, %c0_5] : memref<1x512xf32, #tpu.memory_space<vmem>>, vector<1x512xf32>
    %5 = vector.broadcast %4 : vector<1x512xf32> to vector<256x512xf32>
    %6 = arith.addf %3, %5 : vector<256x512xf32>
    %7 = vector.extract_strided_slice %6 {offsets = [0, 0], sizes = [256, 256], strides = [1, 1]} : vector<256x512xf32> to vector<256x256xf32>
    %c0_6 = arith.constant 0 : index
    %c0_7 = arith.constant 0 : index
    %c0_8 = arith.constant 0 : index
    %8 = vector.load %arg5[%c0_6, %c0_7, %c0_8] : memref<1x256x256xf32, #tpu.memory_space<vmem>>, vector<1x256x256xf32>
    %9 = vector.shape_cast %8 : vector<1x256x256xf32> to vector<256x256xf32>
    %10 = vector.shape_cast %7 : vector<256x256xf32> to vector<1x256x256xf32>
    tpu.vector_store %arg5[%c0_6, %c0_7, %c0_8], %10 {strides = array<i32>} : memref<1x256x256xf32, #tpu.memory_space<vmem>>, vector<1x256x256xf32>,
    %11 = vector.extract_strided_slice %6 {offsets = [0, 256], sizes = [256, 256], strides = [1, 1]} : vector<256x512xf32> to vector<256x256xf32>
    %c0_9 = arith.constant 0 : index
    %c0_10 = arith.constant 0 : index
    %c0_11 = arith.constant 0 : index
    %12 = vector.load %arg6[%c0_9, %c0_10, %c0_11] : memref<1x256x256xf32, #tpu.memory_space<vmem>>, vector<1x256x256xf32>
    %13 = vector.shape_cast %12 : vector<1x256x256xf32> to vector<256x256xf32>
    %14 = vector.shape_cast %11 : vector<256x256xf32> to vector<1x256x256xf32>
    tpu.vector_store %arg6[%c0_9, %c0_10, %c0_11], %14 {strides = array<i32>} : memref<1x256x256xf32, #tpu.memory_space<vmem>>, vector<1x256x256xf32>,
    return
  }
  func.func @transform_0(%arg0: i32, %arg1: i32) -> (i32, i32, i32) {
    %c0_i32 = arith.constant 0 : i32
    %c0_i32_0 = arith.constant 0 : i32
    return %arg0, %arg1, %c0_i32 : i32, i32, i32
  }
  func.func @transform_1(%arg0: i32, %arg1: i32) -> (i32, i32) {
    %c0_i32 = arith.constant 0 : i32
    %c0_i32_0 = arith.constant 0 : i32
    %c0_i32_1 = arith.constant 0 : i32
    return %c0_i32, %c0_i32_0 : i32, i32
  }
  func.func @transform_2(%arg0: i32, %arg1: i32) -> (i32, i32) {
    %c0_i32 = arith.constant 0 : i32
    %c0_i32_0 = arith.constant 0 : i32
    %c0_i32_1 = arith.constant 0 : i32
    return %c0_i32, %c0_i32_0 : i32, i32
  }
  func.func @transform_3(%arg0: i32, %arg1: i32) -> (i32, i32, i32) {
    %c0_i32 = arith.constant 0 : i32
    %c0_i32_0 = arith.constant 0 : i32
    return %arg0, %arg1, %c0_i32 : i32, i32, i32
  }
  func.func @transform_4(%arg0: i32, %arg1: i32) -> (i32, i32, i32) {
    %c0_i32 = arith.constant 0 : i32
    %c0_i32_0 = arith.constant 0 : i32
    return %arg0, %arg1, %c0_i32 : i32, i32, i32
  }
}

</mosaic_0001>

<llo_original>
// kernel: tpu_custom_call.1
$region0: #{tpu_custom_call.1}
  #allocation0 [shape = 'u32[]', space=smem, size = 0x4, offset = 0x4, fixed_abs, tag = 'smem constant byte address 0x4 - core index']
  #allocation1 [shape = 'u32[144,128]{1,0:T(1,128)}', space=vmem, size = 0x12000, scoped, tag = 'internal scratch']
  %s0 = inlined_call_operand.vmem [shape: f32[2,256,16], index: 0, kind: input, shape index: {}]
  %s1 = inlined_call_operand.vmem [shape: f32[16,512], index: 1, kind: input, shape index: {}]
  %s2 = inlined_call_operand.vmem [shape: f32[1,512], index: 2, kind: input, shape index: {}]
  %s3 = inlined_call_operand.hbm [shape: f32[2,256,256], index: 3, kind: output, shape index: {0}]
  %s4 = inlined_call_operand.hbm [shape: f32[2,256,256], index: 4, kind: output, shape index: {1}]
  %5 = xla_tuple %s3, %s4
  %s6 = sld [smem:[#allocation0]]
  $region53: #{tpu_custom_call.1} parent=0
    _
  %s8 = ssub.s32 1, %s6
  %s9 = scalar_select 0, %s8, %s6
  $region1: #{tpu_custom_call.1} parent=0
    #allocation2 [shape = 'u8[524288]{0}', space=vmem, size = 0x80000, scoped, tag = 'output window, operand 0']
    #allocation3 [shape = 's32[2]{0}', space=sflag, size = 0x8, scoped, tag = 'scoped memory for tpu_custom_call.1']
    #allocation4 [shape = 'u8[524288]{0}', space=vmem, size = 0x80000, scoped, tag = 'output window, operand 1']
    #allocation5 [shape = 's32[2]{0}', space=sflag, size = 0x8, scoped, tag = 'scoped memory for tpu_custom_call.1']
    %10 = vsyncpa [#allocation3], 0
    %s11 = scalar_lea.sflag [#allocation3], 1
    %12 = vsyncpa %s11, 0
    %13 = vsyncpa [#allocation5], 0
    %s14 = scalar_lea.sflag [#allocation5], 1
    %15 = vsyncpa %s14, 0
    loop: start=0, step=1, limit=4
    $region2: #{tpu_custom_call.1} parent=1 // loop_pre_header
      _
    $region3: #{tpu_custom_call.1} parent=1 // loop_header
      %s17 = sphi 0, %s21
      %p18 = scmp.ge.s32.totalorder %s17, 4
      %s24 = sphi 0, %s36
      %s25 = sphi 0, %s32
      %s26 = sphi 0, %s24
      %s27 = sphi 0, %s25
      %s28 = sphi 0, %s26
      %s29 = sphi 0, %s27
      %s41 = sphi 0, %s43
      %s44 = sphi 0, %s41
      %s45 = sphi 0, %s44
      %s61 = sphi 0, %s45
      %s65 = sphi 0, %s65
      %s67 = sphi 0, %s65
      %s68 = sphi 0, %s67
      %s82 = sphi 0, %s68
      %s86 = sphi 0, %s86
      %s88 = sphi 0, %s86
      %s89 = sphi 0, %s88
      %s103 = sphi 0, %s89
      %s111 = sphi 0, %s113
      %s114 = sphi 0, %s111
      %s115 = sphi 0, %s114
      %s131 = sphi 0, %s115
      %s139 = sphi 0, %s141
      %s142 = sphi 0, %s139
      %s143 = sphi 0, %s142
      %s159 = sphi 0, %s143
    $region4: #{tpu_custom_call.1} parent=1 // loop_header_branch
      %20 = sbr.rel (%p18) target = $region8
    $region5: #{tpu_custom_call.1} parent=1 // loop_body
      %s22 = ssub.s32 %s17, 1
      %s23 = ssub.s32 %s17, 2
      %s30 = sadd.s32 1, %s25
      %p31 = scmp.ge.s32.totalorder %s30, 1
      %s32 = scalar_select %p31, 0, %s30
      %s33 = sadd.s32 1, %s24
      %s34 = scalar_select %p31, %s33, %s24
      %p35 = scmp.ge.s32.totalorder %s34, 2
      %s36 = scalar_select %p35, 0, %s34
      %s37 = ssub.s32 %s24, %s36
      %s38 = ssub.s32 %s25, %s32
      %s39 = sor.u32 %s37, %s38
      %p40 = scmp.eq.s32.totalorder %s39, 0
      %s42 = sadd.s32 %s41, 1
      %s43 = scalar_select %p40, %s41, %s42
      %p46 = pneg %p40
      %p47 = scmp.eq.s32.totalorder %s17, 1
      %p48 = por %p46, %p47
      %p49 = scmp.ne.s32.totalorder %s41, %s44
      %p50 = scmp.eq.s32.totalorder %s17, 0
      %p51 = por %p49, %p50
      %p52 = scmp.ne.s32.totalorder %s41, %s44
      %p53 = scmp.eq.s32.totalorder %s22, 1
      %p54 = por %p52, %p53
      %p55 = scmp.ne.s32.totalorder %s44, %s45
      %p56 = scmp.eq.s32.totalorder %s22, 0
      %p57 = por %p55, %p56
      %p58 = scmp.ne.s32.totalorder %s44, %s45
      %p59 = scmp.eq.s32.totalorder %s23, 1
      %p60 = por %p58, %p59
      %p62 = scmp.ne.s32.totalorder %s45, %s61
      %p63 = scmp.eq.s32.totalorder %s23, 0
      %p64 = por %p62, %p63
      %s66 = sadd.s32 %s65, 1
      %p69 = scmp.eq.s32.totalorder %s17, 1
      %p70 = scmp.ne.s32.totalorder %s65, %s67
      %p71 = scmp.eq.s32.totalorder %s17, 0
      %p72 = por %p70, %p71
      %p73 = scmp.ne.s32.totalorder %s65, %s67
      %p74 = scmp.eq.s32.totalorder %s22, 1
      %p75 = por %p73, %p74
      %p76 = scmp.ne.s32.totalorder %s67, %s68
      %p77 = scmp.eq.s32.totalorder %s22, 0
      %p78 = por %p76, %p77
      %p79 = scmp.ne.s32.totalorder %s67, %s68
      %p80 = scmp.eq.s32.totalorder %s23, 1
      %p81 = por %p79, %p80
      %p83 = scmp.ne.s32.totalorder %s68, %s82
      %p84 = scmp.eq.s32.totalorder %s23, 0
      %p85 = por %p83, %p84
      %s87 = sadd.s32 %s86, 1
      %p90 = scmp.eq.s32.totalorder %s17, 1
      %p91 = scmp.ne.s32.totalorder %s86, %s88
      %p92 = scmp.eq.s32.totalorder %s17, 0
      %p93 = por %p91, %p92
      %p94 = scmp.ne.s32.totalorder %s86, %s88
      %p95 = scmp.eq.s32.totalorder %s22, 1
      %p96 = por %p94, %p95
      %p97 = scmp.ne.s32.totalorder %s88, %s89
      %p98 = scmp.eq.s32.totalorder %s22, 0
      %p99 = por %p97, %p98
      %p100 = scmp.ne.s32.totalorder %s88, %s89
      %p101 = scmp.eq.s32.totalorder %s23, 1
      %p102 = por %p100, %p101
      %p104 = scmp.ne.s32.totalorder %s89, %s103
      %p105 = scmp.eq.s32.totalorder %s23, 0
      %p106 = por %p104, %p105
      %s107 = ssub.s32 %s24, %s36
      %s108 = ssub.s32 %s25, %s32
      %s109 = sor.u32 %s107, %s108
      %p110 = scmp.eq.s32.totalorder %s109, 0
      %s112 = sadd.s32 %s111, 1
      %s113 = scalar_select %p110, %s111, %s112
      %p116 = pneg %p110
      %p117 = scmp.eq.s32.totalorder %s17, 1
      %p118 = por %p116, %p117
      %p119 = scmp.ne.s32.totalorder %s111, %s114
      %p120 = scmp.eq.s32.totalorder %s17, 0
      %p121 = por %p119, %p120
      %p122 = scmp.ne.s32.totalorder %s111, %s114
      %p123 = scmp.eq.s32.totalorder %s22, 1
      %p124 = por %p122, %p123
      %p125 = scmp.ne.s32.totalorder %s114, %s115
      %p126 = scmp.eq.s32.totalorder %s22, 0
      %p127 = por %p125, %p126
      %p128 = scmp.ne.s32.totalorder %s114, %s115
      %p129 = scmp.eq.s32.totalorder %s23, 1
      %p130 = por %p128, %p129
      %p132 = scmp.ne.s32.totalorder %s115, %s131
      %p133 = scmp.eq.s32.totalorder %s23, 0
      %p134 = por %p132, %p133
      %s135 = ssub.s32 %s24, %s36
      %s136 = ssub.s32 %s25, %s32
      %s137 = sor.u32 %s135, %s136
      %p138 = scmp.eq.s32.totalorder %s137, 0
      %s140 = sadd.s32 %s139, 1
      %s141 = scalar_select %p138, %s139, %s140
      %p144 = pneg %p138
      %p145 = scmp.eq.s32.totalorder %s17, 1
      %p146 = por %p144, %p145
      %p147 = scmp.ne.s32.totalorder %s139, %s142
      %p148 = scmp.eq.s32.totalorder %s17, 0
      %p149 = por %p147, %p148
      %p150 = scmp.ne.s32.totalorder %s139, %s142
      %p151 = scmp.eq.s32.totalorder %s22, 1
      %p152 = por %p150, %p151
      %p153 = scmp.ne.s32.totalorder %s142, %s143
      %p154 = scmp.eq.s32.totalorder %s22, 0
      %p155 = por %p153, %p154
      %p156 = scmp.ne.s32.totalorder %s142, %s143
      %p157 = scmp.eq.s32.totalorder %s23, 1
      %p158 = por %p156, %p157
      %p160 = scmp.ne.s32.totalorder %s143, %s159
      %p161 = scmp.eq.s32.totalorder %s23, 0
      %p162 = por %p160, %p161
      %p163 = scmp.le.s32.totalorder 1, %s17
      %p164 = scmp.lt.s32.totalorder %s17, 3
      %p165 = pnand %p163, %p164
      %p166 = pneg %p165
      // Predicated region
      $region9: #{tpu_custom_call.1} parent=5 // pred_check
        _
      $region10: #{tpu_custom_call.1} parent=5 // pred_check_branch
        %168 = sbr.rel (%p165) target = $region12
      $region11: #{tpu_custom_call.1} parent=5 // pred_region
        %s169 = ssub.s32 %s17, 1
        // Predicated region
        $region13: #{tpu_custom_call.1} parent=11 // pred_check
          %p170 = pneg %p78
        $region14: #{tpu_custom_call.1} parent=11 // pred_check_branch
          %172 = sbr.rel (%p170) target = $region16
        $region15: #{tpu_custom_call.1} parent=11 // pred_region
          _
        $region16: #{tpu_custom_call.1} parent=11 // pred_fallthru
          _
        // Predicated region
        $region17: #{tpu_custom_call.1} parent=11 // pred_check
          %p173 = pneg %p99
        $region18: #{tpu_custom_call.1} parent=11 // pred_check_branch
          %175 = sbr.rel (%p173) target = $region20
        $region19: #{tpu_custom_call.1} parent=11 // pred_region
          _
        $region20: #{tpu_custom_call.1} parent=11 // pred_fallthru
          _
      $region12: #{tpu_custom_call.1} parent=5 // pred_fallthru
        _
      %p176 = scmp.lt.s32.totalorder %s17, 2
      // Predicated region
      $region21: #{tpu_custom_call.1} parent=5 // pred_check
        %p177 = pneg %p176
      $region22: #{tpu_custom_call.1} parent=5 // pred_check_branch
        %179 = sbr.rel (%p177) target = $region24
      $region23: #{tpu_custom_call.1} parent=5 // pred_region
        // Predicated region
        $region25: #{tpu_custom_call.1} parent=23 // pred_check
          %p180 = pneg %p51
        $region26: #{tpu_custom_call.1} parent=23 // pred_check_branch
          %182 = sbr.rel (%p180) target = $region28
        $region27: #{tpu_custom_call.1} parent=23 // pred_region
          %s183 = smul.u32 32, %s25
          %p184 = scmp.lt.s32.totalorder %s24, 1
          %s185 = scalar_select %p184, %s24, 1
          %p186 = scmp.lt.s32.totalorder %s183, 31
          %s187 = scalar_select %p186, %s183, 31
          %s188 = smul.addr %s185, 32
          %s189 = sadd.s32 %s187, %s188
          %s190 = smul.addr %s189, 8
          %s191 = scalar_lea.vmem %s0, %s190
          %s192 = smul.u32 32, %s25
        $region28: #{tpu_custom_call.1} parent=23 // pred_fallthru
          _
      $region24: #{tpu_custom_call.1} parent=5 // pred_fallthru
        _
      %p193 = scmp.le.s32.totalorder 1, %s17
      %p194 = scmp.lt.s32.totalorder %s17, 3
      %p195 = pnand %p193, %p194
      %p196 = pneg %p195
      // Predicated region
      $region29: #{tpu_custom_call.1} parent=5 // pred_check
        _
      $region30: #{tpu_custom_call.1} parent=5 // pred_check_branch
        %198 = sbr.rel (%p195) target = $region32
      $region31: #{tpu_custom_call.1} parent=5 // pred_region
        %s199 = ssub.s32 %s17, 1
        %s200 = smul.u32 32, %s27
        %p201 = scmp.lt.s32.totalorder %s26, 1
        %s202 = scalar_select %p201, %s26, 1
        %p203 = scmp.lt.s32.totalorder %s200, 31
        %s204 = scalar_select %p203, %s200, 31
        %s205 = smul.addr %s202, 32
        %s206 = sadd.s32 %s204, %s205
        %s207 = smul.addr %s206, 8
        %s208 = scalar_lea.vmem %s0, %s207
        %p209 = pneg %p57
        %p210 = pneg %p54
        %p211 = pneg %p78
        %p212 = pneg %p75
        %p213 = pneg %p99
        %p214 = pneg %p96
        %p215 = pneg %p127
        %p216 = pneg %p124
        %s217 = sand.u32 %s114, 1
        %s218 = scalar_lea.sflag [#allocation3], %s217
        %s219 = sand.u32 %s114, 1
        %s220 = smul.addr %s219, 512
        %s221 = scalar_lea.vmem [#allocation2], %s220
        %p222 = pneg %p155
        %p223 = pneg %p152
        %s224 = sand.u32 %s142, 1
        %s225 = scalar_lea.sflag [#allocation5], %s224
        %s226 = sand.u32 %s142, 1
        %s227 = smul.addr %s226, 512
        %s228 = scalar_lea.vmem [#allocation4], %s227
        %s229 = smul.u32 32, %s27
        %p230 = scmp.lt.s32.totalorder %s26, 1
        %s231 = scalar_select %p230, %s26, 1
        %p232 = scmp.lt.s32.totalorder %s229, 31
        %s233 = scalar_select %p232, %s229, 31
        %s234 = smul.addr %s231, 32
        %s235 = sadd.s32 %s233, %s234
        %s236 = smul.addr %s235, 8
        %s237 = scalar_lea.vmem %s0, %s236
        %s238 = smul.u32 32, %s27
        %s239 = smul.u32 32, %s27
        %s240 = smul.u32 32, %s27
        %v241 = vld [vmem:[%s237] sm:$0xff]
        %v242 = vld [vmem:[%s237 + $0x8] sm:$0xff]
        %v243 = vld [vmem:[%s237 + $0x10] sm:$0xff]
        %v244 = vld [vmem:[%s237 + $0x18] sm:$0xff]
        %v245 = vld [vmem:[%s237 + $0x20] sm:$0xff]
        %v246 = vld [vmem:[%s237 + $0x28] sm:$0xff]
        %v247 = vld [vmem:[%s237 + $0x30] sm:$0xff]
        %v248 = vld [vmem:[%s237 + $0x38] sm:$0xff]
        %v249 = vld [vmem:[%s237 + $0x40] sm:$0xff]
        %v250 = vld [vmem:[%s237 + $0x48] sm:$0xff]
        %v251 = vld [vmem:[%s237 + $0x50] sm:$0xff]
        %v252 = vld [vmem:[%s237 + $0x58] sm:$0xff]
        %v253 = vld [vmem:[%s237 + $0x60] sm:$0xff]
        %v254 = vld [vmem:[%s237 + $0x68] sm:$0xff]
        %v255 = vld [vmem:[%s237 + $0x70] sm:$0xff]
        %v256 = vld [vmem:[%s237 + $0x78] sm:$0xff]
        %v257 = vld [vmem:[%s237 + $0x80] sm:$0xff]
        %v258 = vld [vmem:[%s237 + $0x88] sm:$0xff]
        %v259 = vld [vmem:[%s237 + $0x90] sm:$0xff]
        %v260 = vld [vmem:[%s237 + $0x98] sm:$0xff]
        %v261 = vld [vmem:[%s237 + $0xa0] sm:$0xff]
        %v262 = vld [vmem:[%s237 + $0xa8] sm:$0xff]
        %v263 = vld [vmem:[%s237 + $0xb0] sm:$0xff]
        %v264 = vld [vmem:[%s237 + $0xb8] sm:$0xff]
        %v265 = vld [vmem:[%s237 + $0xc0] sm:$0xff]
        %v266 = vld [vmem:[%s237 + $0xc8] sm:$0xff]
        %v267 = vld [vmem:[%s237 + $0xd0] sm:$0xff]
        %v268 = vld [vmem:[%s237 + $0xd8] sm:$0xff]
        %v269 = vld [vmem:[%s237 + $0xe0] sm:$0xff]
        %v270 = vld [vmem:[%s237 + $0xe8] sm:$0xff]
        %v271 = vld [vmem:[%s237 + $0xf0] sm:$0xff]
        %v272 = vld [vmem:[%s237 + $0xf8] sm:$0xff]
        %v273 = vld [vmem:[%s1] sm:$0xff]
        %v274 = vld [vmem:[%s1 + $0x8] sm:$0xff]
        %v275 = vld [vmem:[%s1 + $0x10] sm:$0xff]
        %v276 = vld [vmem:[%s1 + $0x18] sm:$0xff]
        %v277 = vld [vmem:[%s1 + $0x20] sm:$0xff]
        %v278 = vld [vmem:[%s1 + $0x28] sm:$0xff]
        %v279 = vld [vmem:[%s1 + $0x30] sm:$0xff]
        %v280 = vld [vmem:[%s1 + $0x38] sm:$0xff]
        %v281 = vld [vmem:[%s2] sm:$0xf]
        %v283 = vlaneseq
        %v284 = vshrl.u32 %v283, 7
        %v285 = vsub.s32 0, %v284
        %v286 = vrot.slane %v281, %v285
        %v287 = vlaneseq
        %v288 = vshrl.u32 %v287, 7
        %v289 = vsub.s32 1, %v288
        %v290 = vrot.slane %v281, %v289
        %v291 = vlaneseq
        %v292 = vshrl.u32 %v291, 7
        %v293 = vsub.s32 2, %v292
        %v294 = vrot.slane %v281, %v293
        %v295 = vlaneseq
        %v296 = vshrl.u32 %v295, 7
        %v297 = vsub.s32 3, %v296
        %v298 = vrot.slane %v281, %v297
        %vm303 = vcmask 130048
        %v305 = vsel %vm303, %v241, 0
        %v308 = vsel %vm303, %v242, 0
        %v311 = vsel %vm303, %v243, 0
        %v314 = vsel %vm303, %v244, 0
        %v317 = vsel %vm303, %v245, 0
        %v320 = vsel %vm303, %v246, 0
        %v323 = vsel %vm303, %v247, 0
        %v326 = vsel %vm303, %v248, 0
        %v329 = vsel %vm303, %v249, 0
        %v332 = vsel %vm303, %v250, 0
        %v335 = vsel %vm303, %v251, 0
        %v338 = vsel %vm303, %v252, 0
        %v341 = vsel %vm303, %v253, 0
        %v344 = vsel %vm303, %v254, 0
        %v347 = vsel %vm303, %v255, 0
        %v350 = vsel %vm303, %v256, 0
        %v353 = vsel %vm303, %v257, 0
        %v356 = vsel %vm303, %v258, 0
        %v359 = vsel %vm303, %v259, 0
        %v362 = vsel %vm303, %v260, 0
        %v365 = vsel %vm303, %v261, 0
        %v368 = vsel %vm303, %v262, 0
        %v371 = vsel %vm303, %v263, 0
        %v374 = vsel %vm303, %v264, 0
        %v377 = vsel %vm303, %v265, 0
        %v380 = vsel %vm303, %v266, 0
        %v383 = vsel %vm303, %v267, 0
        %v386 = vsel %vm303, %v268, 0
        %v389 = vsel %vm303, %v269, 0
        %v392 = vsel %vm303, %v270, 0
        %v395 = vsel %vm303, %v271, 0
        %v398 = vsel %vm303, %v272, 0
        %400 = vmatprep.subr.mxu0 %v274
        %401 = vmatpush1.msra.mxu0 %v273
        %402 = vmatprep.subr.mxu0 %v278
        %403 = vmatpush1.msra.mxu0 %v277
        %404 = vmatprep.subr.mxu0 0.0
        %405 = vmatpush1.msra.mxu0 0.0
        %406 = vmatprep.subr.mxu0 0.0
        %407 = vmatpush1.msra.mxu0 0.0
        %408 = vmatprep.subr.mxu0 0.0
        %409 = vmatpush1.msra.mxu0 0.0
        %410 = vmatprep.subr.mxu0 0.0
        %411 = vmatpush1.msra.mxu0 0.0
        %412 = vmatprep.subr.mxu0 0.0
        %413 = vmatpush1.msra.mxu0 0.0
        %414 = vmatprep.subr.mxu0 0.0
        %415 = vmatpush1.msra.mxu0 0.0
        %416 = vmatprep.subr.mxu0 0.0
        %417 = vmatpush1.msra.mxu0 0.0
        %418 = vmatprep.subr.mxu0 0.0
        %419 = vmatpush1.msra.mxu0 0.0
        %420 = vmatprep.subr.mxu0 0.0
        %421 = vmatpush1.msra.mxu0 0.0
        %422 = vmatprep.subr.mxu0 0.0
        %423 = vmatpush1.msra.mxu0 0.0
        %424 = vmatprep.subr.mxu0 0.0
        %425 = vmatpush1.msra.mxu0 0.0
        %426 = vmatprep.subr.mxu0 0.0
        %427 = vmatpush1.msra.mxu0 0.0
        %428 = vmatprep.subr.mxu0 0.0
        %429 = vmatpush1.msra.mxu0 0.0
        %430 = vmatprep.subr.mxu0 0.0
        %431 = vmatpush1.msra.mxu0 0.0
        %432 = vmatprep.subr.mxu0 0.0
        %433 = vmatpush1.msra.mxu0 0.0
        %434 = vmatprep.subr.mxu0 0.0
        %435 = vmatpush1.msra.mxu0 0.0
        %436 = vmatprep.subr.mxu0 0.0
        %437 = vmatpush1.msra.mxu0 0.0
        %438 = vmatprep.subr.mxu0 0.0
        %439 = vmatpush1.msra.mxu0 0.0
        %440 = vmatprep.subr.mxu0 0.0
        %441 = vmatpush1.msra.mxu0 0.0
        %442 = vmatprep.subr.mxu0 0.0
        %443 = vmatpush1.msra.mxu0 0.0
        %444 = vmatprep.subr.mxu0 0.0
        %445 = vmatpush1.msra.mxu0 0.0
        %446 = vmatprep.subr.mxu0 0.0
        %447 = vmatpush1.msra.mxu0 0.0
        %448 = vmatprep.subr.mxu0 0.0
        %449 = vmatpush1.msra.mxu0 0.0
        %450 = vmatprep.subr.mxu0 0.0
        %451 = vmatpush1.msra.mxu0 0.0
        %452 = vmatprep.subr.mxu0 0.0
        %453 = vmatpush1.msra.mxu0 0.0
        %454 = vmatprep.subr.mxu0 0.0
        %455 = vmatpush1.msra.mxu0 0.0
        %456 = vmatprep.subr.mxu0 0.0
        %457 = vmatpush1.msra.mxu0 0.0
        %458 = vmatprep.subr.mxu0 0.0
        %459 = vmatpush1.msra.mxu0 0.0
        %460 = vmatprep.subr.mxu0 0.0
        %461 = vmatpush1.msra.mxu0 0.0
        %462 = vmatprep.subr.mxu0 0.0
        %463 = vmatpush1.msra.mxu0 0.0
        %464 = vmatprep.mubr.f32.mxu0 0.0
        %465 = vmatmul.mubr.f32.gmra.mrb[0].mxu0 %v305
        %v466 = vpop.f32.mrb[0].mxu0
        %v467 = vadd.f32 %v286, %v466
        %v468 = vpop.f32.mrb[0].mxu0
        %v469 = vadd.f32 %v290, %v468
        %470 = vmatprep.mubr.f32.mxu0 0.0
        %471 = vmatmul.mubr.f32.gmra.mrb[0].mxu0 %v308
        %v472 = vpop.f32.mrb[0].mxu0
        %v473 = vadd.f32 %v286, %v472
        %v474 = vpop.f32.mrb[0].mxu0
        %v475 = vadd.f32 %v290, %v474
        %476 = vmatprep.mubr.f32.mxu0 0.0
        %477 = vmatmul.mubr.f32.gmra.mrb[0].mxu0 %v311
        %v478 = vpop.f32.mrb[0].mxu0
        %v479 = vadd.f32 %v286, %v478
        %v480 = vpop.f32.mrb[0].mxu0
        %v481 = vadd.f32 %v290, %v480
        %482 = vmatprep.mubr.f32.mxu0 0.0
        %483 = vmatmul.mubr.f32.gmra.mrb[0].mxu0 %v314
        %v484 = vpop.f32.mrb[0].mxu0
        %v485 = vadd.f32 %v286, %v484
        %v486 = vpop.f32.mrb[0].mxu0
        %v487 = vadd.f32 %v290, %v486
        %488 = vmatprep.mubr.f32.mxu0 0.0
        %489 = vmatmul.mubr.f32.gmra.mrb[0].mxu0 %v317
        %v490 = vpop.f32.mrb[0].mxu0
        %v491 = vadd.f32 %v286, %v490
        %v492 = vpop.f32.mrb[0].mxu0
        %v493 = vadd.f32 %v290, %v492
        %494 = vmatprep.mubr.f32.mxu0 0.0
        %495 = vmatmul.mubr.f32.gmra.mrb[0].mxu0 %v320
        %v496 = vpop.f32.mrb[0].mxu0
        %v497 = vadd.f32 %v286, %v496
        %v498 = vpop.f32.mrb[0].mxu0
        %v499 = vadd.f32 %v290, %v498
        %500 = vmatprep.mubr.f32.mxu0 0.0
        %501 = vmatmul.mubr.f32.gmra.mrb[0].mxu0 %v323
        %v502 = vpop.f32.mrb[0].mxu0
        %v503 = vadd.f32 %v286, %v502
        %v504 = vpop.f32.mrb[0].mxu0
        %v505 = vadd.f32 %v290, %v504
        %506 = vmatprep.mubr.f32.mxu0 0.0
        %507 = vmatmul.mubr.f32.gmra.mrb[0].mxu0 %v326
        %v508 = vpop.f32.mrb[0].mxu0
        %v509 = vadd.f32 %v286, %v508
        %v510 = vpop.f32.mrb[0].mxu0
        %v511 = vadd.f32 %v290, %v510
        %512 = vmatprep.mubr.f32.mxu0 0.0
        %513 = vmatmul.mubr.f32.gmra.mrb[0].mxu0 %v329
        %v514 = vpop.f32.mrb[0].mxu0
        %v515 = vadd.f32 %v286, %v514
        %v516 = vpop.f32.mrb[0].mxu0
        %v517 = vadd.f32 %v290, %v516
        %518 = vmatprep.mubr.f32.mxu0 0.0
        %519 = vmatmul.mubr.f32.gmra.mrb[0].mxu0 %v332
        %v520 = vpop.f32.mrb[0].mxu0
        %v521 = vadd.f32 %v286, %v520
        %v522 = vpop.f32.mrb[0].mxu0
        %v523 = vadd.f32 %v290, %v522
        %524 = vmatprep.mubr.f32.mxu0 0.0
        %525 = vmatmul.mubr.f32.gmra.mrb[0].mxu0 %v335
        %v526 = vpop.f32.mrb[0].mxu0
        %v527 = vadd.f32 %v286, %v526
        %v528 = vpop.f32.mrb[0].mxu0
        %v529 = vadd.f32 %v290, %v528
        %530 = vmatprep.mubr.f32.mxu0 0.0
        %531 = vmatmul.mubr.f32.gmra.mrb[0].mxu0 %v338
        %v532 = vpop.f32.mrb[0].mxu0
        %v533 = vadd.f32 %v286, %v532
        %v534 = vpop.f32.mrb[0].mxu0
        %v535 = vadd.f32 %v290, %v534
        %536 = vmatprep.mubr.f32.mxu0 0.0
        %537 = vmatmul.mubr.f32.gmra.mrb[0].mxu0 %v341
        %v538 = vpop.f32.mrb[0].mxu0
        %v539 = vadd.f32 %v286, %v538
        %v540 = vpop.f32.mrb[0].mxu0
        %v541 = vadd.f32 %v290, %v540
        %542 = vmatprep.mubr.f32.mxu0 0.0
        %543 = vmatmul.mubr.f32.gmra.mrb[0].mxu0 %v344
        %v544 = vpop.f32.mrb[0].mxu0
        %v545 = vadd.f32 %v286, %v544
        %v546 = vpop.f32.mrb[0].mxu0
        %v547 = vadd.f32 %v290, %v546
        %548 = vmatprep.mubr.f32.mxu0 0.0
        %549 = vmatmul.mubr.f32.gmra.mrb[0].mxu0 %v347
        %v550 = vpop.f32.mrb[0].mxu0
        %v551 = vadd.f32 %v286, %v550
        %v552 = vpop.f32.mrb[0].mxu0
        %v553 = vadd.f32 %v290, %v552
        %554 = vmatprep.mubr.f32.mxu0 0.0
        %555 = vmatmul.mubr.f32.gmra.mrb[0].mxu0 %v350
        %v556 = vpop.f32.mrb[0].mxu0
        %v557 = vadd.f32 %v286, %v556
        %v558 = vpop.f32.mrb[0].mxu0
        %v559 = vadd.f32 %v290, %v558
        %560 = vmatprep.mubr.f32.mxu0 0.0
        %561 = vmatmul.mubr.f32.gmra.mrb[0].mxu0 %v353
        %v562 = vpop.f32.mrb[0].mxu0
        %v563 = vadd.f32 %v286, %v562
        %v564 = vpop.f32.mrb[0].mxu0
        %v565 = vadd.f32 %v290, %v564
        %566 = vmatprep.mubr.f32.mxu0 0.0
        %567 = vmatmul.mubr.f32.gmra.mrb[0].mxu0 %v356
        %v568 = vpop.f32.mrb[0].mxu0
        %v569 = vadd.f32 %v286, %v568
        %v570 = vpop.f32.mrb[0].mxu0
        %v571 = vadd.f32 %v290, %v570
        %572 = vmatprep.mubr.f32.mxu0 0.0
        %573 = vmatmul.mubr.f32.gmra.mrb[0].mxu0 %v359
        %v574 = vpop.f32.mrb[0].mxu0
        %v575 = vadd.f32 %v286, %v574
        %v576 = vpop.f32.mrb[0].mxu0
        %v577 = vadd.f32 %v290, %v576
        %578 = vmatprep.mubr.f32.mxu0 0.0
        %579 = vmatmul.mubr.f32.gmra.mrb[0].mxu0 %v362
        %v580 = vpop.f32.mrb[0].mxu0
        %v581 = vadd.f32 %v286, %v580
        %v582 = vpop.f32.mrb[0].mxu0
        %v583 = vadd.f32 %v290, %v582
        %584 = vmatprep.mubr.f32.mxu0 0.0
        %585 = vmatmul.mubr.f32.gmra.mrb[0].mxu0 %v365
        %v586 = vpop.f32.mrb[0].mxu0
        %v587 = vadd.f32 %v286, %v586
        %v588 = vpop.f32.mrb[0].mxu0
        %v589 = vadd.f32 %v290, %v588
        %590 = vmatprep.mubr.f32.mxu0 0.0
        %591 = vmatmul.mubr.f32.gmra.mrb[0].mxu0 %v368
        %v592 = vpop.f32.mrb[0].mxu0
        %v593 = vadd.f32 %v286, %v592
        %v594 = vpop.f32.mrb[0].mxu0
        %v595 = vadd.f32 %v290, %v594
        %596 = vmatprep.mubr.f32.mxu0 0.0
        %597 = vmatmul.mubr.f32.gmra.mrb[0].mxu0 %v371
        %v598 = vpop.f32.mrb[0].mxu0
        %v599 = vadd.f32 %v286, %v598
        %v600 = vpop.f32.mrb[0].mxu0
        %v601 = vadd.f32 %v290, %v600
        %602 = vmatprep.mubr.f32.mxu0 0.0
        %603 = vmatmul.mubr.f32.gmra.mrb[0].mxu0 %v374
        %v604 = vpop.f32.mrb[0].mxu0
        %v605 = vadd.f32 %v286, %v604
        %v606 = vpop.f32.mrb[0].mxu0
        %v607 = vadd.f32 %v290, %v606
        %608 = vmatprep.mubr.f32.mxu0 0.0
        %609 = vmatmul.mubr.f32.gmra.mrb[0].mxu0 %v377
        %v610 = vpop.f32.mrb[0].mxu0
        %v611 = vadd.f32 %v286, %v610
        %v612 = vpop.f32.mrb[0].mxu0
        %v613 = vadd.f32 %v290, %v612
        %614 = vmatprep.mubr.f32.mxu0 0.0
        %615 = vmatmul.mubr.f32.gmra.mrb[0].mxu0 %v380
        %v616 = vpop.f32.mrb[0].mxu0
        %v617 = vadd.f32 %v286, %v616
        %v618 = vpop.f32.mrb[0].mxu0
        %v619 = vadd.f32 %v290, %v618
        %620 = vmatprep.mubr.f32.mxu0 0.0
        %621 = vmatmul.mubr.f32.gmra.mrb[0].mxu0 %v383
        %v622 = vpop.f32.mrb[0].mxu0
        %v623 = vadd.f32 %v286, %v622
        %v624 = vpop.f32.mrb[0].mxu0
        %v625 = vadd.f32 %v290, %v624
        %626 = vmatprep.mubr.f32.mxu0 0.0
        %627 = vmatmul.mubr.f32.gmra.mrb[0].mxu0 %v386
        %v628 = vpop.f32.mrb[0].mxu0
        %v629 = vadd.f32 %v286, %v628
        %v630 = vpop.f32.mrb[0].mxu0
        %v631 = vadd.f32 %v290, %v630
        %632 = vmatprep.mubr.f32.mxu0 0.0
        %633 = vmatmul.mubr.f32.gmra.mrb[0].mxu0 %v389
        %v634 = vpop.f32.mrb[0].mxu0
        %v635 = vadd.f32 %v286, %v634
        %v636 = vpop.f32.mrb[0].mxu0
        %v637 = vadd.f32 %v290, %v636
        %638 = vmatprep.mubr.f32.mxu0 0.0
        %639 = vmatmul.mubr.f32.gmra.mrb[0].mxu0 %v392
        %v640 = vpop.f32.mrb[0].mxu0
        %v641 = vadd.f32 %v286, %v640
        %v642 = vpop.f32.mrb[0].mxu0
        %v643 = vadd.f32 %v290, %v642
        %644 = vmatprep.mubr.f32.mxu0 0.0
        %645 = vmatmul.mubr.f32.gmra.mrb[0].mxu0 %v395
        %v646 = vpop.f32.mrb[0].mxu0
        %v647 = vadd.f32 %v286, %v646
        %v648 = vpop.f32.mrb[0].mxu0
        %v649 = vadd.f32 %v290, %v648
        %650 = vmatprep.mubr.f32.mxu0 0.0
        %651 = vmatmul.mubr.f32.gmra.mrb[0].mxu0 %v398
        %v652 = vpop.f32.mrb[0].mxu0
        %v653 = vadd.f32 %v286, %v652
        %v654 = vpop.f32.mrb[0].mxu0
        %v655 = vadd.f32 %v290, %v654
        %656 = vdwg.mxu0
        %657 = vmatprep.subr.mxu0 %v276
        %658 = vmatpush1.msra.mxu0 %v275
        %659 = vmatprep.subr.mxu0 %v280
        %660 = vmatpush1.msra.mxu0 %v279
        %661 = vmatprep.subr.mxu0 0.0
        %662 = vmatpush1.msra.mxu0 0.0
        %663 = vmatprep.subr.mxu0 0.0
        %664 = vmatpush1.msra.mxu0 0.0
        %665 = vmatprep.subr.mxu0 0.0
        %666 = vmatpush1.msra.mxu0 0.0
        %667 = vmatprep.subr.mxu0 0.0
        %668 = vmatpush1.msra.mxu0 0.0
        %669 = vmatprep.subr.mxu0 0.0
        %670 = vmatpush1.msra.mxu0 0.0
        %671 = vmatprep.subr.mxu0 0.0
        %672 = vmatpush1.msra.mxu0 0.0
        %673 = vmatprep.subr.mxu0 0.0
        %674 = vmatpush1.msra.mxu0 0.0
        %675 = vmatprep.subr.mxu0 0.0
        %676 = vmatpush1.msra.mxu0 0.0
        %677 = vmatprep.subr.mxu0 0.0
        %678 = vmatpush1.msra.mxu0 0.0
        %679 = vmatprep.subr.mxu0 0.0
        %680 = vmatpush1.msra.mxu0 0.0
        %681 = vmatprep.subr.mxu0 0.0
        %682 = vmatpush1.msra.mxu0 0.0
        %683 = vmatprep.subr.mxu0 0.0
        %684 = vmatpush1.msra.mxu0 0.0
        %685 = vmatprep.subr.mxu0 0.0
        %686 = vmatpush1.msra.mxu0 0.0
        %687 = vmatprep.subr.mxu0 0.0
        %688 = vmatpush1.msra.mxu0 0.0
        %689 = vmatprep.subr.mxu0 0.0
        %690 = vmatpush1.msra.mxu0 0.0
        %691 = vmatprep.subr.mxu0 0.0
        %692 = vmatpush1.msra.mxu0 0.0
        %693 = vmatprep.subr.mxu0 0.0
        %694 = vmatpush1.msra.mxu0 0.0
        %695 = vmatprep.subr.mxu0 0.0
        %696 = vmatpush1.msra.mxu0 0.0
        %697 = vmatprep.subr.mxu0 0.0
        %698 = vmatpush1.msra.mxu0 0.0
        %699 = vmatprep.subr.mxu0 0.0
        %700 = vmatpush1.msra.mxu0 0.0
        %701 = vmatprep.subr.mxu0 0.0
        %702 = vmatpush1.msra.mxu0 0.0
        %703 = vmatprep.subr.mxu0 0.0
        %704 = vmatpush1.msra.mxu0 0.0
        %705 = vmatprep.subr.mxu0 0.0
        %706 = vmatpush1.msra.mxu0 0.0
        %707 = vmatprep.subr.mxu0 0.0
        %708 = vmatpush1.msra.mxu0 0.0
        %709 = vmatprep.subr.mxu0 0.0
        %710 = vmatpush1.msra.mxu0 0.0
        %711 = vmatprep.subr.mxu0 0.0
        %712 = vmatpush1.msra.mxu0 0.0
        %713 = vmatprep.subr.mxu0 0.0
        %714 = vmatpush1.msra.mxu0 0.0
        %715 = vmatprep.subr.mxu0 0.0
        %716 = vmatpush1.msra.mxu0 0.0
        %717 = vmatprep.subr.mxu0 0.0
        %718 = vmatpush1.msra.mxu0 0.0
        %719 = vmatprep.subr.mxu0 0.0
        %720 = vmatpush1.msra.mxu0 0.0
        %721 = vmatprep.mubr.f32.mxu0 0.0
        %722 = vmatmul.mubr.f32.gmra.mrb[0].mxu0 %v305
        %v723 = vpop.f32.mrb[0].mxu0
        %v724 = vadd.f32 %v294, %v723
        %v725 = vpop.f32.mrb[0].mxu0
        %v726 = vadd.f32 %v298, %v725
        %727 = vmatprep.mubr.f32.mxu0 0.0
        %728 = vmatmul.mubr.f32.gmra.mrb[0].mxu0 %v308
        %v729 = vpop.f32.mrb[0].mxu0
        %v730 = vadd.f32 %v294, %v729
        %v731 = vpop.f32.mrb[0].mxu0
        %v732 = vadd.f32 %v298, %v731
        %733 = vmatprep.mubr.f32.mxu0 0.0
        %734 = vmatmul.mubr.f32.gmra.mrb[0].mxu0 %v311
        %v735 = vpop.f32.mrb[0].mxu0
        %v736 = vadd.f32 %v294, %v735
        %v737 = vpop.f32.mrb[0].mxu0
        %v738 = vadd.f32 %v298, %v737
        %739 = vmatprep.mubr.f32.mxu0 0.0
        %740 = vmatmul.mubr.f32.gmra.mrb[0].mxu0 %v314
        %v741 = vpop.f32.mrb[0].mxu0
        %v742 = vadd.f32 %v294, %v741
        %v743 = vpop.f32.mrb[0].mxu0
        %v744 = vadd.f32 %v298, %v743
        %745 = vmatprep.mubr.f32.mxu0 0.0
        %746 = vmatmul.mubr.f32.gmra.mrb[0].mxu0 %v317
        %v747 = vpop.f32.mrb[0].mxu0
        %v748 = vadd.f32 %v294, %v747
        %v749 = vpop.f32.mrb[0].mxu0
        %v750 = vadd.f32 %v298, %v749
        %751 = vmatprep.mubr.f32.mxu0 0.0
        %752 = vmatmul.mubr.f32.gmra.mrb[0].mxu0 %v320
        %v753 = vpop.f32.mrb[0].mxu0
        %v754 = vadd.f32 %v294, %v753
        %v755 = vpop.f32.mrb[0].mxu0
        %v756 = vadd.f32 %v298, %v755
        %757 = vmatprep.mubr.f32.mxu0 0.0
        %758 = vmatmul.mubr.f32.gmra.mrb[0].mxu0 %v323
        %v759 = vpop.f32.mrb[0].mxu0
        %v760 = vadd.f32 %v294, %v759
        %v761 = vpop.f32.mrb[0].mxu0
        %v762 = vadd.f32 %v298, %v761
        %763 = vmatprep.mubr.f32.mxu0 0.0
        %764 = vmatmul.mubr.f32.gmra.mrb[0].mxu0 %v326
        %v765 = vpop.f32.mrb[0].mxu0
        %v766 = vadd.f32 %v294, %v765
        %v767 = vpop.f32.mrb[0].mxu0
        %v768 = vadd.f32 %v298, %v767
        %769 = vmatprep.mubr.f32.mxu0 0.0
        %770 = vmatmul.mubr.f32.gmra.mrb[0].mxu0 %v329
        %v771 = vpop.f32.mrb[0].mxu0
        %v772 = vadd.f32 %v294, %v771
        %v773 = vpop.f32.mrb[0].mxu0
        %v774 = vadd.f32 %v298, %v773
        %775 = vmatprep.mubr.f32.mxu0 0.0
        %776 = vmatmul.mubr.f32.gmra.mrb[0].mxu0 %v332
        %v777 = vpop.f32.mrb[0].mxu0
        %v778 = vadd.f32 %v294, %v777
        %v779 = vpop.f32.mrb[0].mxu0
        %v780 = vadd.f32 %v298, %v779
        %781 = vmatprep.mubr.f32.mxu0 0.0
        %782 = vmatmul.mubr.f32.gmra.mrb[0].mxu0 %v335
        %v783 = vpop.f32.mrb[0].mxu0
        %v784 = vadd.f32 %v294, %v783
        %v785 = vpop.f32.mrb[0].mxu0
        %v786 = vadd.f32 %v298, %v785
        %787 = vmatprep.mubr.f32.mxu0 0.0
        %788 = vmatmul.mubr.f32.gmra.mrb[0].mxu0 %v338
        %v789 = vpop.f32.mrb[0].mxu0
        %v790 = vadd.f32 %v294, %v789
        %v791 = vpop.f32.mrb[0].mxu0
        %v792 = vadd.f32 %v298, %v791
        %793 = vmatprep.mubr.f32.mxu0 0.0
        %794 = vmatmul.mubr.f32.gmra.mrb[0].mxu0 %v341
        %v795 = vpop.f32.mrb[0].mxu0
        %v796 = vadd.f32 %v294, %v795
        %v797 = vpop.f32.mrb[0].mxu0
        %v798 = vadd.f32 %v298, %v797
        %799 = vmatprep.mubr.f32.mxu0 0.0
        %800 = vmatmul.mubr.f32.gmra.mrb[0].mxu0 %v344
        %v801 = vpop.f32.mrb[0].mxu0
        %v802 = vadd.f32 %v294, %v801
        %v803 = vpop.f32.mrb[0].mxu0
        %v804 = vadd.f32 %v298, %v803
        %805 = vmatprep.mubr.f32.mxu0 0.0
        %806 = vmatmul.mubr.f32.gmra.mrb[0].mxu0 %v347
        %v807 = vpop.f32.mrb[0].mxu0
        %v808 = vadd.f32 %v294, %v807
        %v809 = vpop.f32.mrb[0].mxu0
        %v810 = vadd.f32 %v298, %v809
        %811 = vmatprep.mubr.f32.mxu0 0.0
        %812 = vmatmul.mubr.f32.gmra.mrb[0].mxu0 %v350
        %v813 = vpop.f32.mrb[0].mxu0
        %v814 = vadd.f32 %v294, %v813
        %v815 = vpop.f32.mrb[0].mxu0
        %v816 = vadd.f32 %v298, %v815
        %817 = vmatprep.mubr.f32.mxu0 0.0
        %818 = vmatmul.mubr.f32.gmra.mrb[0].mxu0 %v353
        %v819 = vpop.f32.mrb[0].mxu0
        %v820 = vadd.f32 %v294, %v819
        %v821 = vpop.f32.mrb[0].mxu0
        %v822 = vadd.f32 %v298, %v821
        %823 = vmatprep.mubr.f32.mxu0 0.0
        %824 = vmatmul.mubr.f32.gmra.mrb[0].mxu0 %v356
        %v825 = vpop.f32.mrb[0].mxu0
        %v826 = vadd.f32 %v294, %v825
        %v827 = vpop.f32.mrb[0].mxu0
        %v828 = vadd.f32 %v298, %v827
        %829 = vmatprep.mubr.f32.mxu0 0.0
        %830 = vmatmul.mubr.f32.gmra.mrb[0].mxu0 %v359
        %v831 = vpop.f32.mrb[0].mxu0
        %v832 = vadd.f32 %v294, %v831
        %v833 = vpop.f32.mrb[0].mxu0
        %v834 = vadd.f32 %v298, %v833
        %835 = vmatprep.mubr.f32.mxu0 0.0
        %836 = vmatmul.mubr.f32.gmra.mrb[0].mxu0 %v362
        %v837 = vpop.f32.mrb[0].mxu0
        %v838 = vadd.f32 %v294, %v837
        %v839 = vpop.f32.mrb[0].mxu0
        %v840 = vadd.f32 %v298, %v839
        %841 = vmatprep.mubr.f32.mxu0 0.0
        %842 = vmatmul.mubr.f32.gmra.mrb[0].mxu0 %v365
        %v843 = vpop.f32.mrb[0].mxu0
        %v844 = vadd.f32 %v294, %v843
        %v845 = vpop.f32.mrb[0].mxu0
        %v846 = vadd.f32 %v298, %v845
        %847 = vmatprep.mubr.f32.mxu0 0.0
        %848 = vmatmul.mubr.f32.gmra.mrb[0].mxu0 %v368
        %v849 = vpop.f32.mrb[0].mxu0
        %v850 = vadd.f32 %v294, %v849
        %v851 = vpop.f32.mrb[0].mxu0
        %v852 = vadd.f32 %v298, %v851
        %853 = vmatprep.mubr.f32.mxu0 0.0
        %854 = vmatmul.mubr.f32.gmra.mrb[0].mxu0 %v371
        %v855 = vpop.f32.mrb[0].mxu0
        %v856 = vadd.f32 %v294, %v855
        %v857 = vpop.f32.mrb[0].mxu0
        %v858 = vadd.f32 %v298, %v857
        %859 = vmatprep.mubr.f32.mxu0 0.0
        %860 = vmatmul.mubr.f32.gmra.mrb[0].mxu0 %v374
        %v861 = vpop.f32.mrb[0].mxu0
        %v862 = vadd.f32 %v294, %v861
        %v863 = vpop.f32.mrb[0].mxu0
        %v864 = vadd.f32 %v298, %v863
        %865 = vmatprep.mubr.f32.mxu0 0.0
        %866 = vmatmul.mubr.f32.gmra.mrb[0].mxu0 %v377
        %v867 = vpop.f32.mrb[0].mxu0
        %v868 = vadd.f32 %v294, %v867
        %v869 = vpop.f32.mrb[0].mxu0
        %v870 = vadd.f32 %v298, %v869
        %871 = vmatprep.mubr.f32.mxu0 0.0
        %872 = vmatmul.mubr.f32.gmra.mrb[0].mxu0 %v380
        %v873 = vpop.f32.mrb[0].mxu0
        %v874 = vadd.f32 %v294, %v873
        %v875 = vpop.f32.mrb[0].mxu0
        %v876 = vadd.f32 %v298, %v875
        %877 = vmatprep.mubr.f32.mxu0 0.0
        %878 = vmatmul.mubr.f32.gmra.mrb[0].mxu0 %v383
        %v879 = vpop.f32.mrb[0].mxu0
        %v880 = vadd.f32 %v294, %v879
        %v881 = vpop.f32.mrb[0].mxu0
        %v882 = vadd.f32 %v298, %v881
        %883 = vmatprep.mubr.f32.mxu0 0.0
        %884 = vmatmul.mubr.f32.gmra.mrb[0].mxu0 %v386
        %v885 = vpop.f32.mrb[0].mxu0
        %v886 = vadd.f32 %v294, %v885
        %v887 = vpop.f32.mrb[0].mxu0
        %v888 = vadd.f32 %v298, %v887
        %889 = vmatprep.mubr.f32.mxu0 0.0
        %890 = vmatmul.mubr.f32.gmra.mrb[0].mxu0 %v389
        %v891 = vpop.f32.mrb[0].mxu0
        %v892 = vadd.f32 %v294, %v891
        %v893 = vpop.f32.mrb[0].mxu0
        %v894 = vadd.f32 %v298, %v893
        %895 = vmatprep.mubr.f32.mxu0 0.0
        %896 = vmatmul.mubr.f32.gmra.mrb[0].mxu0 %v392
        %v897 = vpop.f32.mrb[0].mxu0
        %v898 = vadd.f32 %v294, %v897
        %v899 = vpop.f32.mrb[0].mxu0
        %v900 = vadd.f32 %v298, %v899
        %901 = vmatprep.mubr.f32.mxu0 0.0
        %902 = vmatmul.mubr.f32.gmra.mrb[0].mxu0 %v395
        %v903 = vpop.f32.mrb[0].mxu0
        %v904 = vadd.f32 %v294, %v903
        %v905 = vpop.f32.mrb[0].mxu0
        %v906 = vadd.f32 %v298, %v905
        %907 = vmatprep.mubr.f32.mxu0 0.0
        %908 = vmatmul.mubr.f32.gmra.mrb[0].mxu0 %v398
        %v909 = vpop.f32.mrb[0].mxu0
        %v910 = vadd.f32 %v294, %v909
        %v911 = vpop.f32.mrb[0].mxu0
        %v912 = vadd.f32 %v298, %v911
        %913 = vdwg.mxu0
        %914 = vst [vmem:[%s221] sm:$0xff] %v467
        %915 = vst [vmem:[%s221 + $0x8] sm:$0xff] %v469
        %916 = vst [vmem:[%s221 + $0x10] sm:$0xff] %v473
        %917 = vst [vmem:[%s221 + $0x18] sm:$0xff] %v475
        %918 = vst [vmem:[%s221 + $0x20] sm:$0xff] %v479
        %919 = vst [vmem:[%s221 + $0x28] sm:$0xff] %v481
        %920 = vst [vmem:[%s221 + $0x30] sm:$0xff] %v485
        %921 = vst [vmem:[%s221 + $0x38] sm:$0xff] %v487
        %922 = vst [vmem:[%s221 + $0x40] sm:$0xff] %v491
        %923 = vst [vmem:[%s221 + $0x48] sm:$0xff] %v493
        %924 = vst [vmem:[%s221 + $0x50] sm:$0xff] %v497
        %925 = vst [vmem:[%s221 + $0x58] sm:$0xff] %v499
        %926 = vst [vmem:[%s221 + $0x60] sm:$0xff] %v503
        %927 = vst [vmem:[%s221 + $0x68] sm:$0xff] %v505
        %928 = vst [vmem:[%s221 + $0x70] sm:$0xff] %v509
        %929 = vst [vmem:[%s221 + $0x78] sm:$0xff] %v511
        %930 = vst [vmem:[%s221 + $0x80] sm:$0xff] %v515
        %931 = vst [vmem:[%s221 + $0x88] sm:$0xff] %v517
        %932 = vst [vmem:[%s221 + $0x90] sm:$0xff] %v521
        %933 = vst [vmem:[%s221 + $0x98] sm:$0xff] %v523
        %934 = vst [vmem:[%s221 + $0xa0] sm:$0xff] %v527
        %935 = vst [vmem:[%s221 + $0xa8] sm:$0xff] %v529
        %936 = vst [vmem:[%s221 + $0xb0] sm:$0xff] %v533
        %937 = vst [vmem:[%s221 + $0xb8] sm:$0xff] %v535
        %938 = vst [vmem:[%s221 + $0xc0] sm:$0xff] %v539
        %939 = vst [vmem:[%s221 + $0xc8] sm:$0xff] %v541
        %940 = vst [vmem:[%s221 + $0xd0] sm:$0xff] %v545
        %941 = vst [vmem:[%s221 + $0xd8] sm:$0xff] %v547
        %942 = vst [vmem:[%s221 + $0xe0] sm:$0xff] %v551
        %943 = vst [vmem:[%s221 + $0xe8] sm:$0xff] %v553
        %944 = vst [vmem:[%s221 + $0xf0] sm:$0xff] %v557
        %945 = vst [vmem:[%s221 + $0xf8] sm:$0xff] %v559
        %946 = vst [vmem:[%s221 + $0x100] sm:$0xff] %v563
        %947 = vst [vmem:[%s221 + $0x108] sm:$0xff] %v565
        %948 = vst [vmem:[%s221 + $0x110] sm:$0xff] %v569
        %949 = vst [vmem:[%s221 + $0x118] sm:$0xff] %v571
        %950 = vst [vmem:[%s221 + $0x120] sm:$0xff] %v575
        %951 = vst [vmem:[%s221 + $0x128] sm:$0xff] %v577
        %952 = vst [vmem:[%s221 + $0x130] sm:$0xff] %v581
        %953 = vst [vmem:[%s221 + $0x138] sm:$0xff] %v583
        %954 = vst [vmem:[%s221 + $0x140] sm:$0xff] %v587
        %955 = vst [vmem:[%s221 + $0x148] sm:$0xff] %v589
        %956 = vst [vmem:[%s221 + $0x150] sm:$0xff] %v593
        %957 = vst [vmem:[%s221 + $0x158] sm:$0xff] %v595
        %958 = vst [vmem:[%s221 + $0x160] sm:$0xff] %v599
        %959 = vst [vmem:[%s221 + $0x168] sm:$0xff] %v601
        %960 = vst [vmem:[%s221 + $0x170] sm:$0xff] %v605
        %961 = vst [vmem:[%s221 + $0x178] sm:$0xff] %v607
        %962 = vst [vmem:[%s221 + $0x180] sm:$0xff] %v611
        %963 = vst [vmem:[%s221 + $0x188] sm:$0xff] %v613
        %964 = vst [vmem:[%s221 + $0x190] sm:$0xff] %v617
        %965 = vst [vmem:[%s221 + $0x198] sm:$0xff] %v619
        %966 = vst [vmem:[%s221 + $0x1a0] sm:$0xff] %v623
        %967 = vst [vmem:[%s221 + $0x1a8] sm:$0xff] %v625
        %968 = vst [vmem:[%s221 + $0x1b0] sm:$0xff] %v629
        %969 = vst [vmem:[%s221 + $0x1b8] sm:$0xff] %v631
        %970 = vst [vmem:[%s221 + $0x1c0] sm:$0xff] %v635
        %971 = vst [vmem:[%s221 + $0x1c8] sm:$0xff] %v637
        %972 = vst [vmem:[%s221 + $0x1d0] sm:$0xff] %v641
        %973 = vst [vmem:[%s221 + $0x1d8] sm:$0xff] %v643
        %974 = vst [vmem:[%s221 + $0x1e0] sm:$0xff] %v647
        %975 = vst [vmem:[%s221 + $0x1e8] sm:$0xff] %v649
        %976 = vst [vmem:[%s221 + $0x1f0] sm:$0xff] %v653
        %977 = vst [vmem:[%s221 + $0x1f8] sm:$0xff] %v655
        %978 = vst [vmem:[%s228] sm:$0xff] %v724
        %979 = vst [vmem:[%s228 + $0x8] sm:$0xff] %v726
        %980 = vst [vmem:[%s228 + $0x10] sm:$0xff] %v730
        %981 = vst [vmem:[%s228 + $0x18] sm:$0xff] %v732
        %982 = vst [vmem:[%s228 + $0x20] sm:$0xff] %v736
        %983 = vst [vmem:[%s228 + $0x28] sm:$0xff] %v738
        %984 = vst [vmem:[%s228 + $0x30] sm:$0xff] %v742
        %985 = vst [vmem:[%s228 + $0x38] sm:$0xff] %v744
        %986 = vst [vmem:[%s228 + $0x40] sm:$0xff] %v748
        %987 = vst [vmem:[%s228 + $0x48] sm:$0xff] %v750
        %988 = vst [vmem:[%s228 + $0x50] sm:$0xff] %v754
        %989 = vst [vmem:[%s228 + $0x58] sm:$0xff] %v756
        %990 = vst [vmem:[%s228 + $0x60] sm:$0xff] %v760
        %991 = vst [vmem:[%s228 + $0x68] sm:$0xff] %v762
        %992 = vst [vmem:[%s228 + $0x70] sm:$0xff] %v766
        %993 = vst [vmem:[%s228 + $0x78] sm:$0xff] %v768
        %994 = vst [vmem:[%s228 + $0x80] sm:$0xff] %v772
        %995 = vst [vmem:[%s228 + $0x88] sm:$0xff] %v774
        %996 = vst [vmem:[%s228 + $0x90] sm:$0xff] %v778
        %997 = vst [vmem:[%s228 + $0x98] sm:$0xff] %v780
        %998 = vst [vmem:[%s228 + $0xa0] sm:$0xff] %v784
        %999 = vst [vmem:[%s228 + $0xa8] sm:$0xff] %v786
        %1000 = vst [vmem:[%s228 + $0xb0] sm:$0xff] %v790
        %1001 = vst [vmem:[%s228 + $0xb8] sm:$0xff] %v792
        %1002 = vst [vmem:[%s228 + $0xc0] sm:$0xff] %v796
        %1003 = vst [vmem:[%s228 + $0xc8] sm:$0xff] %v798
        %1004 = vst [vmem:[%s228 + $0xd0] sm:$0xff] %v802
        %1005 = vst [vmem:[%s228 + $0xd8] sm:$0xff] %v804
        %1006 = vst [vmem:[%s228 + $0xe0] sm:$0xff] %v808
        %1007 = vst [vmem:[%s228 + $0xe8] sm:$0xff] %v810
        %1008 = vst [vmem:[%s228 + $0xf0] sm:$0xff] %v814
        %1009 = vst [vmem:[%s228 + $0xf8] sm:$0xff] %v816
        %1010 = vst [vmem:[%s228 + $0x100] sm:$0xff] %v820
        %1011 = vst [vmem:[%s228 + $0x108] sm:$0xff] %v822
        %1012 = vst [vmem:[%s228 + $0x110] sm:$0xff] %v826
        %1013 = vst [vmem:[%s228 + $0x118] sm:$0xff] %v828
        %1014 = vst [vmem:[%s228 + $0x120] sm:$0xff] %v832
        %1015 = vst [vmem:[%s228 + $0x128] sm:$0xff] %v834
        %1016 = vst [vmem:[%s228 + $0x130] sm:$0xff] %v838
        %1017 = vst [vmem:[%s228 + $0x138] sm:$0xff] %v840
        %1018 = vst [vmem:[%s228 + $0x140] sm:$0xff] %v844
        %1019 = vst [vmem:[%s228 + $0x148] sm:$0xff] %v846
        %1020 = vst [vmem:[%s228 + $0x150] sm:$0xff] %v850
        %1021 = vst [vmem:[%s228 + $0x158] sm:$0xff] %v852
        %1022 = vst [vmem:[%s228 + $0x160] sm:$0xff] %v856
        %1023 = vst [vmem:[%s228 + $0x168] sm:$0xff] %v858
        %1024 = vst [vmem:[%s228 + $0x170] sm:$0xff] %v862
        %1025 = vst [vmem:[%s228 + $0x178] sm:$0xff] %v864
        %1026 = vst [vmem:[%s228 + $0x180] sm:$0xff] %v868
        %1027 = vst [vmem:[%s228 + $0x188] sm:$0xff] %v870
        %1028 = vst [vmem:[%s228 + $0x190] sm:$0xff] %v874
        %1029 = vst [vmem:[%s228 + $0x198] sm:$0xff] %v876
        %1030 = vst [vmem:[%s228 + $0x1a0] sm:$0xff] %v880
        %1031 = vst [vmem:[%s228 + $0x1a8] sm:$0xff] %v882
        %1032 = vst [vmem:[%s228 + $0x1b0] sm:$0xff] %v886
        %1033 = vst [vmem:[%s228 + $0x1b8] sm:$0xff] %v888
        %1034 = vst [vmem:[%s228 + $0x1c0] sm:$0xff] %v892
        %1035 = vst [vmem:[%s228 + $0x1c8] sm:$0xff] %v894
        %1036 = vst [vmem:[%s228 + $0x1d0] sm:$0xff] %v898
        %1037 = vst [vmem:[%s228 + $0x1d8] sm:$0xff] %v900
        %1038 = vst [vmem:[%s228 + $0x1e0] sm:$0xff] %v904
        %1039 = vst [vmem:[%s228 + $0x1e8] sm:$0xff] %v906
        %1040 = vst [vmem:[%s228 + $0x1f0] sm:$0xff] %v910
        %1041 = vst [vmem:[%s228 + $0x1f8] sm:$0xff] %v912
        %s1042 = sand.u32 %s114, 1
        %s1043 = scalar_lea.sflag [#allocation3], %s1042
        %s1044 = sand.u32 %s114, 1
        %s1045 = smul.addr %s1044, 512
        %s1046 = scalar_lea.vmem [#allocation2], %s1045
        %s1047 = sand.u32 %s142, 1
        %s1048 = scalar_lea.sflag [#allocation5], %s1047
        %s1049 = sand.u32 %s142, 1
        %s1050 = smul.addr %s1049, 512
        %s1051 = scalar_lea.vmem [#allocation4], %s1050
        // Predicated region
        $region33: #{tpu_custom_call.1} parent=31 // pred_check
          %p1052 = pneg %p124
        $region34: #{tpu_custom_call.1} parent=31 // pred_check_branch
          %1054 = sbr.rel (%p1052) target = $region36
        $region35: #{tpu_custom_call.1} parent=31 // pred_region
          %s1055 = smul.u32 32, %s27
          %s1057 = ssub.s32 8192, 8192
          %1058 = vsyncadd %s1043, %s1057
          %s1059 = smul.addr %s1055, 2
          %s1060 = smul.addr %s26, 64
          %s1061 = sadd.s32 %s1059, %s1060
          %s1062 = smul.addr %s1061, 128
          %s1063 = scalar_lea.hbm %s3, %s1062
          %s1064 = sshll.u32 %s1046, 4
          %s1065 = int_to_ptr.vmem [resolvable:$true] %s1064
          %1070 = dma.vmem_to_hbm [thread:$0]  %s1065, 8192, %s1063, %s1043, 256, 256, 16
        $region36: #{tpu_custom_call.1} parent=31 // pred_fallthru
          _
        // Predicated region
        $region37: #{tpu_custom_call.1} parent=31 // pred_check
          %p1071 = pneg %p152
        $region38: #{tpu_custom_call.1} parent=31 // pred_check_branch
          %1073 = sbr.rel (%p1071) target = $region40
        $region39: #{tpu_custom_call.1} parent=31 // pred_region
          %s1074 = smul.u32 32, %s27
          %s1076 = ssub.s32 8192, 8192
          %1077 = vsyncadd %s1048, %s1076
          %s1078 = smul.addr %s1074, 2
          %s1079 = smul.addr %s26, 64
          %s1080 = sadd.s32 %s1078, %s1079
          %s1081 = smul.addr %s1080, 128
          %s1082 = scalar_lea.hbm %s4, %s1081
          %s1083 = sshll.u32 %s1051, 4
          %s1084 = int_to_ptr.vmem [resolvable:$true] %s1083
          %1089 = dma.vmem_to_hbm [thread:$0]  %s1084, 8192, %s1082, %s1048, 256, 256, 16
        $region40: #{tpu_custom_call.1} parent=31 // pred_fallthru
          _
      $region32: #{tpu_custom_call.1} parent=5 // pred_fallthru
        _
      %p1090 = scmp.le.s32.totalorder 2, %s17
      // Predicated region
      $region41: #{tpu_custom_call.1} parent=5 // pred_check
        %p1091 = pneg %p1090
      $region42: #{tpu_custom_call.1} parent=5 // pred_check_branch
        %1093 = sbr.rel (%p1091) target = $region44
      $region43: #{tpu_custom_call.1} parent=5 // pred_region
        %s1094 = ssub.s32 %s17, 2
        // Predicated region
        $region45: #{tpu_custom_call.1} parent=43 // pred_check
          %p1095 = pneg %p130
        $region46: #{tpu_custom_call.1} parent=43 // pred_check_branch
          %1097 = sbr.rel (%p1095) target = $region48
        $region47: #{tpu_custom_call.1} parent=43 // pred_region
          %s1098 = sand.u32 %s115, 1
          %s1099 = scalar_lea.sflag [#allocation3], %s1098
          %s1100 = sand.u32 %s115, 1
          %s1101 = smul.addr %s1100, 512
          %s1102 = scalar_lea.vmem [#allocation2], %s1101
          %1103 = dma.done %s1099, 8192
        $region48: #{tpu_custom_call.1} parent=43 // pred_fallthru
          _
        // Predicated region
        $region49: #{tpu_custom_call.1} parent=43 // pred_check
          %p1104 = pneg %p158
        $region50: #{tpu_custom_call.1} parent=43 // pred_check_branch
          %1106 = sbr.rel (%p1104) target = $region52
        $region51: #{tpu_custom_call.1} parent=43 // pred_region
          %s1107 = sand.u32 %s143, 1
          %s1108 = scalar_lea.sflag [#allocation5], %s1107
          %s1109 = sand.u32 %s143, 1
          %s1110 = smul.addr %s1109, 512
          %s1111 = scalar_lea.vmem [#allocation4], %s1110
          %1112 = dma.done %s1108, 8192
        $region52: #{tpu_custom_call.1} parent=43 // pred_fallthru
          _
      $region44: #{tpu_custom_call.1} parent=5 // pred_fallthru
        _
    $region6: #{tpu_custom_call.1} parent=1 // loop_footer
      %s21 = sadd.s32 1, %s17
    $region7: #{tpu_custom_call.1} parent=1 // loop_footer_branch
      %16 = sbr.rel target = $region3
    $region8: #{tpu_custom_call.1} parent=1 // loop_exit
      _
    %1113 = vsyncpa [#allocation3], 1
    %s1114 = scalar_lea.sflag [#allocation3], 1
    %1115 = vsyncpa %s1114, 1
    %1116 = vsyncpa [#allocation5], 1
    %s1117 = scalar_lea.sflag [#allocation5], 1
    %1118 = vsyncpa %s1117, 1

</llo_original>
